<compile_context>
chip_gen: v5e
topology: v5e:2x2
jax: 0.10.0
libtpu: 0.0.40
codegen_flags: <defaults>
</compile_context>

<pallas_src>
import functools

import jax
import jax.numpy as jnp
from jax.experimental import pallas as pl
from jax.experimental.pallas import tpu as pltpu


def _round_up(a, m):
    return (a + m - 1) // m * m


def _surrogate_normal_kernel(x_ref, w1_ref, b1_ref, w2_ref, b2_ref, out_ref,
                             *, loc_dim):
    # Hidden layer: bf16 MXU matmul, f32 accumulation, f32 bias + ReLU.
    h = jnp.dot(x_ref[...], w1_ref[...], preferred_element_type=jnp.float32)
    h = jnp.maximum(h + b1_ref[...], 0.0)
    # Head layer (activation_last=None): bf16 MXU matmul, f32 accumulate+bias.
    y = jnp.dot(h.astype(w2_ref.dtype), w2_ref[...],
                preferred_element_type=jnp.float32)
    y = y + b2_ref[...]
    # One full-tile, lane-dense store: exp only on the scale columns
    # (columns >= loc_dim).  Padding columns are sliced off in the wrapper.
    col = jax.lax.broadcasted_iota(jnp.int32, y.shape, 1)
    out_ref[...] = jnp.where(col >= loc_dim, jnp.exp(y), y)


def surrogate_normal_forward(x, params, loc_shape, scale_shape, *, tm=None):
    """x: (B, *input_shape). Returns (loc, scale) as float32 arrays."""
    B = x.shape[0]
    x_flat = x.reshape(B, -1).astype(jnp.float32)
    Din = x_flat.shape[1]

    w1, b1, w2, b2 = params["w1"], params["b1"], params["w2"], params["b2"]
    H = w1.shape[1]
    loc_dim = 1
    for d in loc_shape:
        loc_dim *= d
    scale_dim = 1
    for d in scale_shape:
        scale_dim *= d
    Dout = loc_dim + scale_dim
    assert w2.shape == (H, Dout)

    # ---- wrapper-side layout prep (plain JAX) ------------------------------
    # Pad the head dim to a multiple of 128 so the kernel's single output
    # store is an unmasked, lane-dense tile.  w2/b2 padded with zeros.
    Dout_pad = _round_up(Dout, 128)
    w2_p = jnp.zeros((H, Dout_pad), jnp.float32).at[:, :Dout].set(w2)
    b2_p = jnp.zeros((1, Dout_pad), jnp.float32).at[:, :Dout].set(
        b2.reshape(1, Dout))

    # Batch tiling: tile is a multiple of 8 (sublane), capped at 256; pad the
    # batch up to a whole number of tiles so every block satisfies the
    # (8, 128) constraint and the x/out DMAs pipeline across grid steps.
    if tm is None:
        tm = min(256, _round_up(B, 8))
    tm = max(8, _round_up(tm, 8))
    B_pad = _round_up(max(B, tm), tm)
    x_p = jnp.zeros((B_pad, Din), jnp.float32).at[:B, :].set(x_flat)

    # bf16 matmul operands; accumulation / bias / ReLU / exp stay f32.
    x_bf = x_p.astype(jnp.bfloat16)
    w1_bf = w1.astype(jnp.bfloat16)
    w2_bf = w2_p.astype(jnp.bfloat16)
    b1_f32 = b1.reshape(1, H).astype(jnp.float32)

    n_blocks = B_pad // tm

    # VMEM budget: double-buffered x/out tiles + resident weights/biases +
    # intermediate slabs, with 2x headroom (capped well under v7x's 64 MiB).
    vmem_bytes = (2 * tm * Din * 2                      # x tile (bf16) x2
                  + 2 * tm * Dout_pad * 4               # out tile (f32) x2
                  + 2 * (Din * H + H * Dout_pad) * 2    # weights (bf16)
                  + 2 * (H + Dout_pad) * 4              # biases (f32)
                  + 2 * tm * (H + Dout_pad) * 4)        # h / y intermediates
    vmem_limit = int(min(64 << 20, max(4 << 20, 2 * vmem_bytes)))

    out = pl.pallas_call(
        functools.partial(_surrogate_normal_kernel, loc_dim=loc_dim),
        out_shape=jax.ShapeDtypeStruct((B_pad, Dout_pad), jnp.float32),
        grid_spec=pl.GridSpec(
            grid=(n_blocks,),
            in_specs=[
                pl.BlockSpec((tm, Din), lambda i: (i, 0)),       # x tile
                pl.BlockSpec((Din, H), lambda i: (0, 0)),        # w1 resident
                pl.BlockSpec((1, H), lambda i: (0, 0)),          # b1 resident
                pl.BlockSpec((H, Dout_pad), lambda i: (0, 0)),   # w2 resident
                pl.BlockSpec((1, Dout_pad), lambda i: (0, 0)),   # b2 resident
            ],
            out_specs=pl.BlockSpec((tm, Dout_pad), lambda i: (i, 0)),
        ),
        compiler_params=pltpu.CompilerParams(
            dimension_semantics=("parallel",),
            vmem_limit_bytes=vmem_limit),
    )(x_bf, w1_bf, b1_f32, w2_bf, b2_p)

    # Split loc / scale and drop padding in plain JAX (layout plumbing only).
    y = out[:B]
    loc = y[:, :loc_dim].reshape((B,) + tuple(loc_shape))
    scale = y[:, loc_dim:Dout].reshape((B,) + tuple(scale_shape))
    # TODO(synk): Normal(loc, scale) distribution object / log_prob is not
    # reproduced here; we return the (loc, scale) tensors.
    return loc, scale


def init_params(key, input_dim, hidden_dim, out_dim):
    k1, k2, k3, k4 = jax.random.split(key, 4)
    # Deterministic small init (synthetic weights, not a checkpoint load).
    w1 = jax.random.normal(k1, (input_dim, hidden_dim), jnp.float32) * 0.05
    b1 = jax.random.normal(k2, (1, hidden_dim), jnp.float32) * 0.01
    w2 = jax.random.normal(k3, (hidden_dim, out_dim), jnp.float32) * 0.05
    b2 = jax.random.normal(k4, (1, out_dim), jnp.float32) * 0.01
    return {"w1": w1, "b1": b1, "w2": w2, "b2": b2}


if __name__ == "__main__":
    key = jax.random.PRNGKey(0)
    kx, kp = jax.random.split(key)

    # Small shapes consistent with the module's forward:
    #   input_shape = (4, 16) -> input_dim = 64
    #   loc_shape = (3, 2), scale_shape = (3, 2) -> head dim = 6 + 6 = 12
    batch = 8
    input_shape = (4, 16)
    loc_shape = (3, 2)
    scale_shape = (3, 2)
    hidden_dim = 32
    input_dim = input_shape[0] * input_shape[1]
    loc_dim = loc_shape[0] * loc_shape[1]
    scale_dim = scale_shape[0] * scale_shape[1]

    x = jax.random.normal(kx, (batch,) + input_shape, jnp.float32)
    params = init_params(kp, input_dim, hidden_dim, loc_dim + scale_dim)

    loc, scale = surrogate_normal_forward(x, params, loc_shape, scale_shape)
    jax.block_until_ready(loc)
    jax.block_until_ready(scale)

    # Reference in plain JAX with the same precision policy as the kernel
    # (bf16 matmul operands, f32 accumulation / bias / ReLU / exp).
    xf = x.reshape(batch, -1)
    h_ref = jnp.maximum(
        jnp.dot(xf.astype(jnp.bfloat16), params["w1"].astype(jnp.bfloat16),
                preferred_element_type=jnp.float32) + params["b1"], 0.0)
    y_ref = jnp.dot(h_ref.astype(jnp.bfloat16),
                    params["w2"].astype(jnp.bfloat16),
                    preferred_element_type=jnp.float32) + params["b2"]
    loc_ref = y_ref[:, :loc_dim].reshape((batch,) + loc_shape)
    scale_ref = jnp.exp(y_ref[:, loc_dim:]).reshape((batch,) + scale_shape)

    assert loc.shape == (batch,) + loc_shape
    assert scale.shape == (batch,) + scale_shape
    assert jnp.allclose(loc, loc_ref, atol=2e-3, rtol=2e-3)
    assert jnp.allclose(scale, scale_ref, atol=2e-3, rtol=2e-3)

    print("KERNEL_OK")
</pallas_src>

<mosaic_0001>
module attributes {stable_mosaic.version = 11 : i64} {
  func.func @_surrogate_normal_kernel(%arg0: i32, %arg1: memref<8x64xbf16, #tpu.memory_space<vmem>>, %arg2: memref<64x32xbf16, #tpu.memory_space<vmem>>, %arg3: memref<1x32xf32, #tpu.memory_space<vmem>>, %arg4: memref<32x128xbf16, #tpu.memory_space<vmem>>, %arg5: memref<1x128xf32, #tpu.memory_space<vmem>>, %arg6: memref<8x128xf32, #tpu.memory_space<vmem>>) attributes {dimension_semantics = [#tpu.dimension_semantics<parallel>], iteration_bounds = array<i64: 1>, scalar_prefetch = 0 : i64, scratch_operands = 0 : i64, tpu.core_type = #tpu.core_type<tc>, window_params = [{transform_indices = @transform_0, window_bounds = array<i64: 8, 64>}, {pipeline_mode = #tpu.pipeline_mode<synchronous>, transform_indices = @transform_1, window_bounds = array<i64: 64, 32>}, {pipeline_mode = #tpu.pipeline_mode<synchronous>, transform_indices = @transform_2, window_bounds = array<i64: 1, 32>}, {pipeline_mode = #tpu.pipeline_mode<synchronous>, transform_indices = @transform_3, window_bounds = array<i64: 32, 128>}, {pipeline_mode = #tpu.pipeline_mode<synchronous>, transform_indices = @transform_4, window_bounds = array<i64: 1, 128>}, {transform_indices = @transform_5, window_bounds = array<i64: 8, 128>}]} {
    %c0 = arith.constant 0 : index
    %c0_0 = arith.constant 0 : index
    %0 = vector.load %arg1[%c0, %c0_0] : memref<8x64xbf16, #tpu.memory_space<vmem>>, vector<8x64xbf16>
    %c0_1 = arith.constant 0 : index
    %c0_2 = arith.constant 0 : index
    %1 = vector.load %arg2[%c0_1, %c0_2] : memref<64x32xbf16, #tpu.memory_space<vmem>>, vector<64x32xbf16>
    %cst = arith.constant dense<0.000000e+00> : vector<8x32xf32>
    %2 = tpu.matmul %0, %1, %cst {dimension_numbers = #tpu.dot_dimension_numbers<[1], [0], [0], [1], [0, 0, 1, 1], [], []>} : vector<8x64xbf16>, vector<64x32xbf16>, vector<8x32xf32> -> vector<8x32xf32>
    %c0_3 = arith.constant 0 : index
    %c0_4 = arith.constant 0 : index
    %3 = vector.load %arg3[%c0_3, %c0_4] : memref<1x32xf32, #tpu.memory_space<vmem>>, vector<1x32xf32>
    %4 = vector.broadcast %3 : vector<1x32xf32> to vector<8x32xf32>
    %5 = arith.addf %2, %4 : vector<8x32xf32>
    %cst_5 = arith.constant 0.000000e+00 : f32
    %6 = vector.broadcast %cst_5 : f32 to vector<8x32xf32>
    %7 = arith.maximumf %5, %6 : vector<8x32xf32>
    %8 = arith.truncf %7 : vector<8x32xf32> to vector<8x32xbf16>
    %c0_6 = arith.constant 0 : index
    %c0_7 = arith.constant 0 : index
    %9 = vector.load %arg4[%c0_6, %c0_7] : memref<32x128xbf16, #tpu.memory_space<vmem>>, vector<32x128xbf16>
    %cst_8 = arith.constant dense<0.000000e+00> : vector<8x128xf32>
    %10 = tpu.matmul %8, %9, %cst_8 {dimension_numbers = #tpu.dot_dimension_numbers<[1], [0], [0], [1], [0, 0, 1, 1], [], []>} : vector<8x32xbf16>, vector<32x128xbf16>, vector<8x128xf32> -> vector<8x128xf32>
    %c0_9 = arith.constant 0 : index
    %c0_10 = arith.constant 0 : index
    %11 = vector.load %arg5[%c0_9, %c0_10] : memref<1x128xf32, #tpu.memory_space<vmem>>, vector<1x128xf32>
    %12 = vector.broadcast %11 : vector<1x128xf32> to vector<8x128xf32>
    %13 = arith.addf %10, %12 : vector<8x128xf32>
    %14 = tpu.iota {dimensions = array<i32: 1>} : vector<8x128xi32>
    %c6_i32 = arith.constant 6 : i32
    %15 = vector.broadcast %c6_i32 : i32 to vector<8x128xi32>
    %16 = arith.cmpi sge, %14, %15 : vector<8x128xi32>
    %17 = math.exp %13 : vector<8x128xf32>
    %18 = arith.select %16, %17, %13 : vector<8x128xi1>, vector<8x128xf32>
    %c0_11 = arith.constant 0 : index
    %c0_12 = arith.constant 0 : index
    %19 = vector.load %arg6[%c0_11, %c0_12] : memref<8x128xf32, #tpu.memory_space<vmem>>, vector<8x128xf32>
    tpu.vector_store %arg6[%c0_11, %c0_12], %18 {strides = array<i32>} : memref<8x128xf32, #tpu.memory_space<vmem>>, vector<8x128xf32>,
    return
  }
  func.func @transform_0(%arg0: i32) -> (i32, i32) {
    %c0_i32 = arith.constant 0 : i32
    %c0_i32_0 = arith.constant 0 : i32
    return %arg0, %c0_i32 : i32, i32
  }
  func.func @transform_1(%arg0: i32) -> (i32, i32) {
    %c0_i32 = arith.constant 0 : i32
    %c0_i32_0 = arith.constant 0 : i32
    %c0_i32_1 = arith.constant 0 : i32
    return %c0_i32, %c0_i32_0 : i32, i32
  }
  func.func @transform_2(%arg0: i32) -> (i32, i32) {
    %c0_i32 = arith.constant 0 : i32
    %c0_i32_0 = arith.constant 0 : i32
    %c0_i32_1 = arith.constant 0 : i32
    return %c0_i32, %c0_i32_0 : i32, i32
  }
  func.func @transform_3(%arg0: i32) -> (i32, i32) {
    %c0_i32 = arith.constant 0 : i32
    %c0_i32_0 = arith.constant 0 : i32
    %c0_i32_1 = arith.constant 0 : i32
    return %c0_i32, %c0_i32_0 : i32, i32
  }
  func.func @transform_4(%arg0: i32) -> (i32, i32) {
    %c0_i32 = arith.constant 0 : i32
    %c0_i32_0 = arith.constant 0 : i32
    %c0_i32_1 = arith.constant 0 : i32
    return %c0_i32, %c0_i32_0 : i32, i32
  }
  func.func @transform_5(%arg0: i32) -> (i32, i32) {
    %c0_i32 = arith.constant 0 : i32
    %c0_i32_0 = arith.constant 0 : i32
    return %arg0, %c0_i32 : i32, i32
  }
}

</mosaic_0001>

<llo_original>
// kernel: tpu_custom_call.1
$region0: #{tpu_custom_call.1}
  #allocation0 [shape = 'u32[]', space=smem, size = 0x4, offset = 0x4, fixed_abs, tag = 'smem constant byte address 0x4 - core index']
  #allocation1 [shape = 'u32[72,128]{1,0:T(1,128)}', space=vmem, size = 0x9000, scoped, tag = 'internal scratch']
  %s0 = inlined_call_operand.vmem [shape: bf16[8,64], index: 0, kind: input, shape index: {}]
  %s1 = inlined_call_operand.vmem [shape: bf16[64,32], index: 1, kind: input, shape index: {}]
  %s2 = inlined_call_operand.vmem [shape: f32[1,32], index: 2, kind: input, shape index: {}]
  %s3 = inlined_call_operand.vmem [shape: bf16[32,128], index: 3, kind: input, shape index: {}]
  %s4 = inlined_call_operand.vmem [shape: f32[1,128], index: 4, kind: input, shape index: {}]
  %s5 = inlined_call_operand.hbm [shape: f32[8,128], index: 5, kind: output, shape index: {}]
  %s6 = sld [smem:[#allocation0]]
  $region30: #{tpu_custom_call.1} parent=0
    _
  %s8 = ssub.s32 1, %s6
  %s9 = scalar_select 0, %s8, %s6
  $region1: #{tpu_custom_call.1} parent=0
    #allocation2 [shape = 'u8[4096]{0}', space=vmem, size = 0x1000, scoped, tag = 'output window, operand 0, single buffered']
    #allocation3 [shape = 's32[1]{0}', space=sflag, size = 0x4, scoped, tag = 'scoped memory for tpu_custom_call.1']
    %10 = vsyncpa [#allocation3], 0
    // Predicated region
    $region2: #{tpu_custom_call.1} parent=1 // pred_check
      _
    $region3: #{tpu_custom_call.1} parent=1 // pred_check_branch
      %12 = sbr.rel (0) target = $region5
    $region4: #{tpu_custom_call.1} parent=1 // pred_region
      _
    $region5: #{tpu_custom_call.1} parent=1 // pred_fallthru
      _
    // Predicated region
    $region6: #{tpu_custom_call.1} parent=1 // pred_check
      _
    $region7: #{tpu_custom_call.1} parent=1 // pred_check_branch
      %14 = sbr.rel (0) target = $region9
    $region8: #{tpu_custom_call.1} parent=1 // pred_region
      _
    $region9: #{tpu_custom_call.1} parent=1 // pred_fallthru
      _
    // Predicated region
    $region10: #{tpu_custom_call.1} parent=1 // pred_check
      _
    $region11: #{tpu_custom_call.1} parent=1 // pred_check_branch
      %16 = sbr.rel (0) target = $region13
    $region12: #{tpu_custom_call.1} parent=1 // pred_region
      _
    $region13: #{tpu_custom_call.1} parent=1 // pred_fallthru
      _
    // Predicated region
    $region14: #{tpu_custom_call.1} parent=1 // pred_check
      _
    $region15: #{tpu_custom_call.1} parent=1 // pred_check_branch
      %18 = sbr.rel (0) target = $region17
    $region16: #{tpu_custom_call.1} parent=1 // pred_region
      _
    $region17: #{tpu_custom_call.1} parent=1 // pred_fallthru
      _
    // Predicated region
    $region18: #{tpu_custom_call.1} parent=1 // pred_check
      _
    $region19: #{tpu_custom_call.1} parent=1 // pred_check_branch
      %20 = sbr.rel (0) target = $region21
    $region20: #{tpu_custom_call.1} parent=1 // pred_region
      _
    $region21: #{tpu_custom_call.1} parent=1 // pred_fallthru
      _
    %v22 = vld [vmem:[%s0] sm:$0xf]
    %v23 = vld [vmem:[%s1] sm:$0xf]
    %v24 = vld [vmem:[%s1 + $0x4] sm:$0xf]
    %v25 = vld [vmem:[%s1 + $0x8] sm:$0xf]
    %v26 = vld [vmem:[%s1 + $0xc] sm:$0xf]
    %v27 = vld [vmem:[%s1 + $0x10] sm:$0xf]
    %v28 = vld [vmem:[%s1 + $0x14] sm:$0xf]
    %v29 = vld [vmem:[%s1 + $0x18] sm:$0xf]
    %v30 = vld [vmem:[%s1 + $0x1c] sm:$0xf]
    %v31 = vld [vmem:[%s2] sm:$0x1]
    %v33 = vperm.slane %v31, 0
    %v43 = vunpack.c.l.b16 %v23
    %v44 = vunpack.c.l.b16 %v24
    %v45 = vunpack.c.l.b16 %v25
    %v46 = vunpack.c.l.b16 %v26
    %v47 = vunpack.c.l.b16 %v27
    %v48 = vunpack.c.l.b16 %v28
    %v49 = vunpack.c.l.b16 %v29
    %v50 = vunpack.c.l.b16 %v30
    %v51 = vpack.c.b16 %v44, %v43
    %v52 = vpack.c.b16 %v46, %v45
    %v53 = vpack.c.b16 %v48, %v47
    %v54 = vpack.c.b16 %v50, %v49
    %vm59 = vcmask 523264
    %v61 = vsel %vm59, %v22, 0
    %63 = vmatpush.bf16.msra.mxu0 0
    %64 = vmatpush.bf16.msra.mxu0 0
    %65 = vmatpush.bf16.msra.mxu0 0
    %66 = vmatpush.bf16.msra.mxu0 0
    %67 = vmatpush.bf16.msra.mxu0 %v54
    %68 = vmatpush.bf16.msra.mxu0 %v53
    %69 = vmatpush.bf16.msra.mxu0 %v52
    %70 = vmatpush.bf16.msra.mxu0 %v51
    %71 = vmatmul.bf16.gmra.mxu0 %v61
    %v72 = vpop.f32.mrf.mxu0
    %v73 = vadd.f32 %v33, %v72
    %v74 = vpop.f32.mrf.mxu0
    %75 = vdwg.mxu0
    %v76 = vmax.f32 %v73, 0.0
    %v77 = vpack.c.bf16 %v76, %v76
    %v78 = vld [vmem:[%s3] sm:$0xf]
    %v79 = vld [vmem:[%s3 + $0x4] sm:$0xf]
    %v80 = vld [vmem:[%s3 + $0x8] sm:$0xf]
    %v81 = vld [vmem:[%s3 + $0xc] sm:$0xf]
    %v82 = vld [vmem:[%s4] sm:$0x1]
    %v84 = vperm.slane %v82, 0
    %v90 = vunpack.c.l.b16 %v78
    %v91 = vunpack.c.l.b16 %v79
    %v92 = vunpack.c.l.b16 %v80
    %v93 = vunpack.c.l.b16 %v81
    %v94 = vpack.c.b16 %v91, %v90
    %v95 = vpack.c.b16 %v93, %v92
    %vm98 = vcmask 261120
    %v100 = vsel %vm98, %v77, 0
    %102 = vmatpush.bf16.msra.mxu0 0
    %103 = vmatpush.bf16.msra.mxu0 0
    %104 = vmatpush.bf16.msra.mxu0 0
    %105 = vmatpush.bf16.msra.mxu0 0
    %106 = vmatpush.bf16.msra.mxu0 0
    %107 = vmatpush.bf16.msra.mxu0 0
    %108 = vmatpush.bf16.msra.mxu0 %v95
    %109 = vmatpush.bf16.msra.mxu0 %v94
    %110 = vmatmul.bf16.gmra.mxu0 %v100
    %v111 = vpop.f32.mrf.mxu0
    %v112 = vadd.f32 %v84, %v111
    %v113 = vpop.f32.mrf.mxu0
    %114 = vdwg.mxu0
    %v115 = vlaneseq
    %v116 = vand.u32 %v115, 127
    %vm117 = vcmp.ge.s32.totalorder %v116, 6
    %v118 = vmul.f32 %v112, 1.442695
    %v119 = vpow.pop %v118
    %v120 = vsel %vm117, %v119, %v112
    %121 = vst [vmem:[#allocation2] sm:$0xff] %v120
    // Predicated region
    $region22: #{tpu_custom_call.1} parent=1 // pred_check
      _
    $region23: #{tpu_custom_call.1} parent=1 // pred_check_branch
      %123 = sbr.rel (0) target = $region25
    $region24: #{tpu_custom_call.1} parent=1 // pred_region
      %125 = vsyncadd [#allocation3], 0
      %s127 = sshll.u32 [#allocation2], 4
      %s128 = int_to_ptr.vmem [resolvable:$true] %s127
      %s129 = sshll.u32 %s5, 4
      %s130 = int_to_ptr.hbm [resolvable:$true] %s129
      %132 = dma.vmem_to_hbm [thread:$0]  %s128, 128, %s130, [#allocation3]
    $region25: #{tpu_custom_call.1} parent=1 // pred_fallthru
      _
    // Predicated region
    $region26: #{tpu_custom_call.1} parent=1 // pred_check
      _
    $region27: #{tpu_custom_call.1} parent=1 // pred_check_branch
      %134 = sbr.rel (0) target = $region29
    $region28: #{tpu_custom_call.1} parent=1 // pred_region
      %136 = dma.done [#allocation3], 128
    $region29: #{tpu_custom_call.1} parent=1 // pred_fallthru
      _
    %137 = vsyncpa [#allocation3], 1

</llo_original>
